<compile_context>
chip_gen: v6e
topology: v6e:2x2x1
jax: 0.10.0
libtpu: 0.0.40
codegen_flags: <defaults>
</compile_context>

<pallas_src>
import jax
import jax.numpy as jnp
from jax.experimental import pallas as pl
from jax.experimental.pallas import tpu as pltpu

HIDDEN = 256
NUM_CLASSES = 15
LANE = 128
SUBLANE = 8


def _round_up(a, b):
    return ((a + b - 1) // b) * b


def mlp_kernel(x_ref, w1_ref, b1_ref, w2_ref, b2_ref, w3_ref, b3_ref, o_ref, acc_ref):
    k = pl.program_id(1)

    @pl.when(k == 0)
    def _init():
        # fold layer-1 bias into the accumulator init (broadcast over batch rows)
        acc_ref[...] = jnp.broadcast_to(b1_ref[...], acc_ref.shape)

    # layer 1: streamed K-slab partial product, f32 accumulation on the MXU
    acc_ref[...] += jnp.dot(x_ref[...], w1_ref[...], preferred_element_type=jnp.float32)

    @pl.when(k == pl.num_programs(1) - 1)
    def _finish():
        # layer 1 ReLU (bias already in acc)
        h1 = jnp.maximum(acc_ref[...], 0.0)
        # layer 2: Linear + ReLU
        h2 = jnp.dot(h1, w2_ref[...], preferred_element_type=jnp.float32)
        h2 = jnp.maximum(h2 + b2_ref[...], 0.0)
        # layer 3: Linear into a lane-padded (tm, 128) output tile
        out = jnp.dot(h2, w3_ref[...], preferred_element_type=jnp.float32) + b3_ref[...]
        o_ref[...] = out.astype(o_ref.dtype)


def mlp_forward(x, w1, b1, w2, b2, w3, b3, *, batch_tile=128, k_tile=8192):
    """x: (B, D) float32.  Returns logits (B, 15) float32.

    batch_tile: rows of x per grid step (128 is MXU-friendly on all chips; the
                spec's DataLoader uses batch 64, i.e. a single tile).
    k_tile:     input-feature slab per grid step (multiple of 128).  At the real
                D = 196608 (divisible by 8192) this streams w1 from HBM in 24
                large slabs, minimizing per-step pipeline overhead.
    """
    B, D = x.shape
    H = w1.shape[1]
    C = w3.shape[1]

    # ---- batch tiling ----
    if B <= batch_tile:
        tm = _round_up(B, SUBLANE)          # one batch tile for tiny batches
    else:
        tm = batch_tile
    Bp = _round_up(B, tm)

    # ---- K (input-feature) tiling ----
    if D <= k_tile:
        tk = _round_up(D, LANE)             # single K step
    else:
        assert k_tile % LANE == 0, "k_tile must be a multiple of 128"
        tk = k_tile
    Dp = _round_up(D, tk)

    # ---- lane-dense padded classifier width ----
    Cp = _round_up(C, LANE)

    # zero padding: padded x columns / w1 rows are zero, so the matmul is unchanged;
    # padded w3/b3 columns are zero, so logits[:, :C] are unchanged.
    if (Bp, Dp) != (B, D):
        x = jnp.pad(x, ((0, Bp - B), (0, Dp - D)))
    if Dp != D:
        w1 = jnp.pad(w1, ((0, Dp - D), (0, 0)))
    w3p = jnp.pad(w3, ((0, 0), (0, Cp - C)))
    b3p = jnp.pad(b3, ((0, Cp - C),))

    # biases as (1, N) rows so they broadcast over the batch tile inside the kernel
    b1r = b1.reshape(1, H)
    b2r = b2.reshape(1, H)
    b3r = b3p.reshape(1, Cp)

    n_bt = Bp // tm
    grid = (n_bt, Dp // tk)

    cost = pl.CostEstimate(
        flops=int(2 * Bp * (Dp * H + H * H + H * Cp)),
        transcendentals=0,
        bytes_accessed=int(
            4 * (Bp * Dp                   # x streamed once
                 + n_bt * Dp * H           # w1 re-streamed per batch tile
                 + H + H * H + H + H * Cp + Cp
                 + Bp * Cp)
        ),
    )

    out = pl.pallas_call(
        mlp_kernel,
        out_shape=jax.ShapeDtypeStruct((Bp, Cp), jnp.float32),
        grid_spec=pltpu.PrefetchScalarGridSpec(
            num_scalar_prefetch=0,
            grid=grid,
            in_specs=[
                # activations: tile over batch (i) and input features (k)
                pl.BlockSpec((tm, tk), lambda i, k: (i, k)),
                # layer-1 weight: streamed along K
                pl.BlockSpec((tk, H), lambda i, k: (k, 0)),
                # constant-index blocks (fetched once, reused every step)
                pl.BlockSpec((1, H), lambda i, k: (0, 0)),
                pl.BlockSpec((H, H), lambda i, k: (0, 0)),
                pl.BlockSpec((1, H), lambda i, k: (0, 0)),
                pl.BlockSpec((H, Cp), lambda i, k: (0, 0)),
                pl.BlockSpec((1, Cp), lambda i, k: (0, 0)),
            ],
            out_specs=pl.BlockSpec((tm, Cp), lambda i, k: (i, 0)),
            scratch_shapes=[pltpu.VMEM((tm, H), jnp.float32)],
        ),
        compiler_params=pltpu.CompilerParams(
            # batch axis parallel (megacore on v7x), reduction axis last + arbitrary
            dimension_semantics=("parallel", "arbitrary"),
            vmem_limit_bytes=48 * 1024 * 1024,  # safe on v7x (64 MiB) and v5e/v6e
        ),
        cost_estimate=cost,
    )(x, w1, b1r, w2, b2r, w3p, b3r)

    return out[:B, :C]


def init_params(key, in_dim, hidden=HIDDEN, num_classes=NUM_CLASSES):
    """Deterministic init mimicking torch.nn.Linear default U(-1/sqrt(fan_in), 1/sqrt(fan_in)).
    Weights are stored as (in_features, out_features)."""
    ks = jax.random.split(key, 6)

    def lin(kw, kb, fan_in, fan_out):
        bound = 1.0 / jnp.sqrt(jnp.float32(fan_in))
        w = jax.random.uniform(kw, (fan_in, fan_out), jnp.float32, -bound, bound)
        b = jax.random.uniform(kb, (fan_out,), jnp.float32, -bound, bound)
        return w, b

    w1, b1 = lin(ks[0], ks[1], in_dim, hidden)
    w2, b2 = lin(ks[2], ks[3], hidden, hidden)
    w3, b3 = lin(ks[4], ks[5], hidden, num_classes)
    return w1, b1, w2, b2, w3, b3


if __name__ == "__main__":
    key = jax.random.PRNGKey(0)
    k_x, k_p, k_x2 = jax.random.split(key, 3)

    # small shapes consistent with the module's forward:
    # flattened 3x16x16 "images", batch = 2, hidden = 256, classes = 15
    B, C_img, HW = 2, 3, 16
    D = C_img * HW * HW  # 768

    x_img = jax.random.normal(k_x, (B, C_img, HW, HW), jnp.float32)
    x = x_img.reshape(B, -1)  # images.view(images.size(0), -1)

    params = init_params(k_p, D)
    w1, b1, w2, b2, w3, b3 = params

    def ref_fn(xx):
        h1 = jnp.maximum(xx @ w1 + b1, 0.0)
        h2 = jnp.maximum(h1 @ w2 + b2, 0.0)
        return h2 @ w3 + b3

    # 1) default config (single batch tile / single K step at this toy size)
    logits = jax.block_until_ready(mlp_forward(x, *params))
    ref = ref_fn(x)
    assert logits.shape == (B, NUM_CLASSES), logits.shape
    assert jnp.allclose(logits, ref, atol=1e-4, rtol=1e-4), (
        float(jnp.max(jnp.abs(logits - ref)))
    )

    # 2) exercise the K-tiled reduction + multiple batch tiles (the same code path
    #    the real D = 3*256*256 model takes), still at small shapes.
    B2 = 20
    x2 = jax.random.normal(k_x2, (B2, D), jnp.float32)
    logits2 = jax.block_until_ready(
        mlp_forward(x2, *params, batch_tile=8, k_tile=256)
    )
    ref2 = ref_fn(x2)
    assert logits2.shape == (B2, NUM_CLASSES), logits2.shape
    assert jnp.allclose(logits2, ref2, atol=1e-4, rtol=1e-4), (
        float(jnp.max(jnp.abs(logits2 - ref2)))
    )

    print("KERNEL_OK")
</pallas_src>

<mosaic_0001>
module attributes {stable_mosaic.version = 11 : i64} {
  func.func @mlp_kernel(%arg0: i32, %arg1: i32, %arg2: memref<8x768xf32, #tpu.memory_space<vmem>>, %arg3: memref<768x256xf32, #tpu.memory_space<vmem>>, %arg4: memref<1x256xf32, #tpu.memory_space<vmem>>, %arg5: memref<256x256xf32, #tpu.memory_space<vmem>>, %arg6: memref<1x256xf32, #tpu.memory_space<vmem>>, %arg7: memref<256x128xf32, #tpu.memory_space<vmem>>, %arg8: memref<1x128xf32, #tpu.memory_space<vmem>>, %arg9: memref<8x128xf32, #tpu.memory_space<vmem>>, %arg10: memref<8x256xf32, #tpu.memory_space<vmem>>) attributes {dimension_semantics = [#tpu.dimension_semantics<parallel>, #tpu.dimension_semantics<arbitrary>], iteration_bounds = array<i64: 1, 1>, scalar_prefetch = 0 : i64, scratch_operands = 1 : i64, tpu.core_type = #tpu.core_type<tc>, window_params = [{transform_indices = @transform_0, window_bounds = array<i64: 8, 768>}, {transform_indices = @transform_1, window_bounds = array<i64: 768, 256>}, {pipeline_mode = #tpu.pipeline_mode<synchronous>, transform_indices = @transform_2, window_bounds = array<i64: 1, 256>}, {pipeline_mode = #tpu.pipeline_mode<synchronous>, transform_indices = @transform_3, window_bounds = array<i64: 256, 256>}, {pipeline_mode = #tpu.pipeline_mode<synchronous>, transform_indices = @transform_4, window_bounds = array<i64: 1, 256>}, {pipeline_mode = #tpu.pipeline_mode<synchronous>, transform_indices = @transform_5, window_bounds = array<i64: 256, 128>}, {pipeline_mode = #tpu.pipeline_mode<synchronous>, transform_indices = @transform_6, window_bounds = array<i64: 1, 128>}, {transform_indices = @transform_7, window_bounds = array<i64: 8, 128>}]} {
    %c0_i32 = arith.constant 0 : i32
    %0 = arith.cmpi eq, %arg1, %c0_i32 : i32
    %1 = arith.extui %0 : i1 to i32
    %c0_i32_0 = arith.constant 0 : i32
    %2 = arith.cmpi ne, %1, %c0_i32_0 : i32
    scf.if %2 {
      %c0_10 = arith.constant 0 : index
      %c0_11 = arith.constant 0 : index
      %12 = vector.load %arg4[%c0_10, %c0_11] : memref<1x256xf32, #tpu.memory_space<vmem>>, vector<1x256xf32>
      %13 = vector.shape_cast %12 : vector<1x256xf32> to vector<1x256xf32>
      %14 = vector.broadcast %13 : vector<1x256xf32> to vector<8x256xf32>
      %c0_12 = arith.constant 0 : index
      %c0_13 = arith.constant 0 : index
      %15 = vector.load %arg10[%c0_12, %c0_13] : memref<8x256xf32, #tpu.memory_space<vmem>>, vector<8x256xf32>
      tpu.vector_store %arg10[%c0_12, %c0_13], %14 {strides = array<i32>} : memref<8x256xf32, #tpu.memory_space<vmem>>, vector<8x256xf32>,
    } else {
    }
    %c0 = arith.constant 0 : index
    %c0_1 = arith.constant 0 : index
    %3 = vector.load %arg10[%c0, %c0_1] : memref<8x256xf32, #tpu.memory_space<vmem>>, vector<8x256xf32>
    %c0_2 = arith.constant 0 : index
    %c0_3 = arith.constant 0 : index
    %4 = vector.load %arg2[%c0_2, %c0_3] : memref<8x768xf32, #tpu.memory_space<vmem>>, vector<8x768xf32>
    %c0_4 = arith.constant 0 : index
    %c0_5 = arith.constant 0 : index
    %5 = vector.load %arg3[%c0_4, %c0_5] : memref<768x256xf32, #tpu.memory_space<vmem>>, vector<768x256xf32>
    %cst = arith.constant dense<0.000000e+00> : vector<8x256xf32>
    %6 = tpu.matmul %4, %5, %cst {dimension_numbers = #tpu.dot_dimension_numbers<[1], [0], [0], [1], [0, 0, 1, 1], [], []>} : vector<8x768xf32>, vector<768x256xf32>, vector<8x256xf32> -> vector<8x256xf32>
    %7 = arith.addf %3, %6 : vector<8x256xf32>
    %c0_6 = arith.constant 0 : index
    %c0_7 = arith.constant 0 : index
    %8 = vector.load %arg10[%c0_6, %c0_7] : memref<8x256xf32, #tpu.memory_space<vmem>>, vector<8x256xf32>
    tpu.vector_store %arg10[%c0_6, %c0_7], %7 {strides = array<i32>} : memref<8x256xf32, #tpu.memory_space<vmem>>, vector<8x256xf32>,
    %c0_i32_8 = arith.constant 0 : i32
    %9 = arith.cmpi eq, %arg1, %c0_i32_8 : i32
    %10 = arith.extui %9 : i1 to i32
    %c0_i32_9 = arith.constant 0 : i32
    %11 = arith.cmpi ne, %10, %c0_i32_9 : i32
    scf.if %11 {
      %c0_10 = arith.constant 0 : index
      %c0_11 = arith.constant 0 : index
      %12 = vector.load %arg10[%c0_10, %c0_11] : memref<8x256xf32, #tpu.memory_space<vmem>>, vector<8x256xf32>
      %cst_12 = arith.constant 0.000000e+00 : f32
      %13 = vector.broadcast %cst_12 : f32 to vector<8x256xf32>
      %14 = arith.maximumf %12, %13 : vector<8x256xf32>
      %c0_13 = arith.constant 0 : index
      %c0_14 = arith.constant 0 : index
      %15 = vector.load %arg5[%c0_13, %c0_14] : memref<256x256xf32, #tpu.memory_space<vmem>>, vector<256x256xf32>
      %cst_15 = arith.constant dense<0.000000e+00> : vector<8x256xf32>
      %16 = tpu.matmul %14, %15, %cst_15 {dimension_numbers = #tpu.dot_dimension_numbers<[1], [0], [0], [1], [0, 0, 1, 1], [], []>} : vector<8x256xf32>, vector<256x256xf32>, vector<8x256xf32> -> vector<8x256xf32>
      %c0_16 = arith.constant 0 : index
      %c0_17 = arith.constant 0 : index
      %17 = vector.load %arg6[%c0_16, %c0_17] : memref<1x256xf32, #tpu.memory_space<vmem>>, vector<1x256xf32>
      %18 = vector.broadcast %17 : vector<1x256xf32> to vector<8x256xf32>
      %19 = arith.addf %16, %18 : vector<8x256xf32>
      %cst_18 = arith.constant 0.000000e+00 : f32
      %20 = vector.broadcast %cst_18 : f32 to vector<8x256xf32>
      %21 = arith.maximumf %19, %20 : vector<8x256xf32>
      %c0_19 = arith.constant 0 : index
      %c0_20 = arith.constant 0 : index
      %22 = vector.load %arg7[%c0_19, %c0_20] : memref<256x128xf32, #tpu.memory_space<vmem>>, vector<256x128xf32>
      %cst_21 = arith.constant dense<0.000000e+00> : vector<8x128xf32>
      %23 = tpu.matmul %21, %22, %cst_21 {dimension_numbers = #tpu.dot_dimension_numbers<[1], [0], [0], [1], [0, 0, 1, 1], [], []>} : vector<8x256xf32>, vector<256x128xf32>, vector<8x128xf32> -> vector<8x128xf32>
      %c0_22 = arith.constant 0 : index
      %c0_23 = arith.constant 0 : index
      %24 = vector.load %arg8[%c0_22, %c0_23] : memref<1x128xf32, #tpu.memory_space<vmem>>, vector<1x128xf32>
      %25 = vector.broadcast %24 : vector<1x128xf32> to vector<8x128xf32>
      %26 = arith.addf %23, %25 : vector<8x128xf32>
      %c0_24 = arith.constant 0 : index
      %c0_25 = arith.constant 0 : index
      %27 = vector.load %arg9[%c0_24, %c0_25] : memref<8x128xf32, #tpu.memory_space<vmem>>, vector<8x128xf32>
      tpu.vector_store %arg9[%c0_24, %c0_25], %26 {strides = array<i32>} : memref<8x128xf32, #tpu.memory_space<vmem>>, vector<8x128xf32>,
    } else {
    }
    return
  }
  func.func @transform_0(%arg0: i32, %arg1: i32) -> (i32, i32) {
    %c0_i32 = arith.constant 0 : i32
    return %arg0, %arg1 : i32, i32
  }
  func.func @transform_1(%arg0: i32, %arg1: i32) -> (i32, i32) {
    %c0_i32 = arith.constant 0 : i32
    %c0_i32_0 = arith.constant 0 : i32
    return %arg1, %c0_i32 : i32, i32
  }
  func.func @transform_2(%arg0: i32, %arg1: i32) -> (i32, i32) {
    %c0_i32 = arith.constant 0 : i32
    %c0_i32_0 = arith.constant 0 : i32
    %c0_i32_1 = arith.constant 0 : i32
    return %c0_i32, %c0_i32_0 : i32, i32
  }
  func.func @transform_3(%arg0: i32, %arg1: i32) -> (i32, i32) {
    %c0_i32 = arith.constant 0 : i32
    %c0_i32_0 = arith.constant 0 : i32
    %c0_i32_1 = arith.constant 0 : i32
    return %c0_i32, %c0_i32_0 : i32, i32
  }
  func.func @transform_4(%arg0: i32, %arg1: i32) -> (i32, i32) {
    %c0_i32 = arith.constant 0 : i32
    %c0_i32_0 = arith.constant 0 : i32
    %c0_i32_1 = arith.constant 0 : i32
    return %c0_i32, %c0_i32_0 : i32, i32
  }
  func.func @transform_5(%arg0: i32, %arg1: i32) -> (i32, i32) {
    %c0_i32 = arith.constant 0 : i32
    %c0_i32_0 = arith.constant 0 : i32
    %c0_i32_1 = arith.constant 0 : i32
    return %c0_i32, %c0_i32_0 : i32, i32
  }
  func.func @transform_6(%arg0: i32, %arg1: i32) -> (i32, i32) {
    %c0_i32 = arith.constant 0 : i32
    %c0_i32_0 = arith.constant 0 : i32
    %c0_i32_1 = arith.constant 0 : i32
    return %c0_i32, %c0_i32_0 : i32, i32
  }
  func.func @transform_7(%arg0: i32, %arg1: i32) -> (i32, i32) {
    %c0_i32 = arith.constant 0 : i32
    %c0_i32_0 = arith.constant 0 : i32
    return %arg0, %c0_i32 : i32, i32
  }
}

</mosaic_0001>

<llo_original>
// kernel: tpu_custom_call.1
$region0: #{tpu_custom_call.1}
  #allocation0 [shape = 'u32[]', space=smem, size = 0x4, offset = 0x4, fixed_abs, tag = 'smem constant byte address 0x4 - core index']
  #allocation1 [shape = 'u32[144,128]{1,0:T(1,128)}', space=vmem, size = 0x12000, scoped, tag = 'internal scratch']
  #allocation2 [shape = 'f32[8,256]{1,0:T(8,128)}', space=vmem, size = 0x2000, scoped, tag = 'scratch operand']
  %s0 = inlined_call_operand.hbm [shape: f32[8,768], index: 0, kind: input, shape index: {}]
  %s1 = inlined_call_operand.hbm [shape: f32[768,256], index: 1, kind: input, shape index: {}]
  %s2 = inlined_call_operand.vmem [shape: f32[1,256], index: 2, kind: input, shape index: {}]
  %s3 = inlined_call_operand.hbm [shape: f32[256,256], index: 3, kind: input, shape index: {}]
  %s4 = inlined_call_operand.vmem [shape: f32[1,256], index: 4, kind: input, shape index: {}]
  %s5 = inlined_call_operand.hbm [shape: f32[256,128], index: 5, kind: input, shape index: {}]
  %s6 = inlined_call_operand.vmem [shape: f32[1,128], index: 6, kind: input, shape index: {}]
  %s7 = inlined_call_operand.hbm [shape: f32[8,128], index: 7, kind: output, shape index: {}]
  %s8 = sld [smem:[#allocation0]]
  $region62: #{tpu_custom_call.1} parent=0
    _
  %s10 = ssub.s32 1, %s8
  %s11 = scalar_select 0, %s10, %s8
  $region1: #{tpu_custom_call.1} parent=0
    #allocation3 [shape = 'u8[24576]{0}', space=vmem, size = 0x6000, scoped, tag = 'input window, operand 0, single buffered']
    #allocation4 [shape = 's32[1]{0}', space=sflag, size = 0x4, scoped, tag = 'scoped memory for tpu_custom_call.1']
    #allocation5 [shape = 's32[1]{0}', space=sflag, size = 0x4, scoped, tag = 'scoped memory for tpu_custom_call.1']
    #allocation6 [shape = 'u8[786432]{0}', space=vmem, size = 0xc0000, scoped, tag = 'input window, operand 1, single buffered']
    #allocation7 [shape = 's32[1]{0}', space=sflag, size = 0x4, scoped, tag = 'scoped memory for tpu_custom_call.1']
    #allocation8 [shape = 'u8[262144]{0}', space=vmem, size = 0x40000, scoped, tag = 'input window, operand 3, single buffered']
    #allocation9 [shape = 'u8[131072]{0}', space=vmem, size = 0x20000, scoped, tag = 'input window, operand 5, single buffered']
    #allocation10 [shape = 's32[1]{0}', space=sflag, size = 0x4, scoped, tag = 'scoped memory for tpu_custom_call.1']
    #allocation11 [shape = 'u8[4096]{0}', space=vmem, size = 0x1000, scoped, tag = 'output window, operand 0, single buffered']
    %12 = vsyncpa [#allocation4], 0
    %13 = vsyncpa [#allocation7], 0
    %14 = vsyncpa [#allocation10], 0
    %15 = vsyncpa [#allocation5], 0
    // Predicated region
    $region2: #{tpu_custom_call.1} parent=1 // pred_check
      _
    $region3: #{tpu_custom_call.1} parent=1 // pred_check_branch
      %17 = sbr.rel (0) target = $region5
    $region4: #{tpu_custom_call.1} parent=1 // pred_region
      %s19 = ssub.s32 768, 768
      %20 = vsyncadd [#allocation4], %s19
      %s22 = sshll.u32 [#allocation3], 4
      %s23 = int_to_ptr.vmem [resolvable:$true] %s22
      %25 = dma.hbm_to_vmem [thread:$0]  %s0, 768, %s23, [#allocation4]
    $region5: #{tpu_custom_call.1} parent=1 // pred_fallthru
      _
    // Predicated region
    $region6: #{tpu_custom_call.1} parent=1 // pred_check
      _
    $region7: #{tpu_custom_call.1} parent=1 // pred_check_branch
      %27 = sbr.rel (0) target = $region9
    $region8: #{tpu_custom_call.1} parent=1 // pred_region
      %s29 = ssub.s32 24576, 24576
      %30 = vsyncadd [#allocation7], %s29
      %s31 = sshll.u32 [#allocation6], 4
      %s32 = int_to_ptr.vmem [resolvable:$true] %s31
      %37 = dma.hbm_to_vmem [thread:$0]  %s1, 24576, %s32, [#allocation7], 256, 256, 16
    $region9: #{tpu_custom_call.1} parent=1 // pred_fallthru
      _
    // Predicated region
    $region10: #{tpu_custom_call.1} parent=1 // pred_check
      _
    $region11: #{tpu_custom_call.1} parent=1 // pred_check_branch
      %39 = sbr.rel (0) target = $region13
    $region12: #{tpu_custom_call.1} parent=1 // pred_region
      _
    $region13: #{tpu_custom_call.1} parent=1 // pred_fallthru
      _
    // Predicated region
    $region14: #{tpu_custom_call.1} parent=1 // pred_check
      _
    $region15: #{tpu_custom_call.1} parent=1 // pred_check_branch
      %41 = sbr.rel (0) target = $region17
    $region16: #{tpu_custom_call.1} parent=1 // pred_region
      %s43 = ssub.s32 8192, 8192
      %44 = vsyncadd [#allocation7], %s43
      %s45 = sshll.u32 [#allocation8], 4
      %s46 = int_to_ptr.vmem [resolvable:$true] %s45
      %51 = dma.hbm_to_vmem [thread:$0]  %s3, 8192, %s46, [#allocation7], 256, 256, 16
    $region17: #{tpu_custom_call.1} parent=1 // pred_fallthru
      _
    // Predicated region
    $region18: #{tpu_custom_call.1} parent=1 // pred_check
      _
    $region19: #{tpu_custom_call.1} parent=1 // pred_check_branch
      %53 = sbr.rel (0) target = $region21
    $region20: #{tpu_custom_call.1} parent=1 // pred_region
      _
    $region21: #{tpu_custom_call.1} parent=1 // pred_fallthru
      _
    // Predicated region
    $region22: #{tpu_custom_call.1} parent=1 // pred_check
      _
    $region23: #{tpu_custom_call.1} parent=1 // pred_check_branch
      %55 = sbr.rel (0) target = $region25
    $region24: #{tpu_custom_call.1} parent=1 // pred_region
      %s57 = ssub.s32 4096, 4096
      %58 = vsyncadd [#allocation10], %s57
      %s59 = sshll.u32 [#allocation9], 4
      %s60 = int_to_ptr.vmem [resolvable:$true] %s59
      %65 = dma.hbm_to_vmem [thread:$0]  %s5, 4096, %s60, [#allocation10], 128, 128, 8
    $region25: #{tpu_custom_call.1} parent=1 // pred_fallthru
      _
    // Predicated region
    $region26: #{tpu_custom_call.1} parent=1 // pred_check
      _
    $region27: #{tpu_custom_call.1} parent=1 // pred_check_branch
      %67 = sbr.rel (0) target = $region29
    $region28: #{tpu_custom_call.1} parent=1 // pred_region
      _
    $region29: #{tpu_custom_call.1} parent=1 // pred_fallthru
      _
    // Predicated region
    $region30: #{tpu_custom_call.1} parent=1 // pred_check
      _
    $region31: #{tpu_custom_call.1} parent=1 // pred_check_branch
      %69 = sbr.rel (0) target = $region33
    $region32: #{tpu_custom_call.1} parent=1 // pred_region
      %70 = dma.done [#allocation4], 768
    $region33: #{tpu_custom_call.1} parent=1 // pred_fallthru
      _
    // Predicated region
    $region34: #{tpu_custom_call.1} parent=1 // pred_check
      _
    $region35: #{tpu_custom_call.1} parent=1 // pred_check_branch
      %72 = sbr.rel (0) target = $region37
    $region36: #{tpu_custom_call.1} parent=1 // pred_region
      %73 = dma.done [#allocation7], 24576
    $region37: #{tpu_custom_call.1} parent=1 // pred_fallthru
      _
    // Predicated region
    $region38: #{tpu_custom_call.1} parent=1 // pred_check
      _
    $region39: #{tpu_custom_call.1} parent=1 // pred_check_branch
      %75 = sbr.rel (0) target = $region41
    $region40: #{tpu_custom_call.1} parent=1 // pred_region
      %76 = dma.done [#allocation7], 8192
    $region41: #{tpu_custom_call.1} parent=1 // pred_fallthru
      _
    // Predicated region
    $region42: #{tpu_custom_call.1} parent=1 // pred_check
      _
    $region43: #{tpu_custom_call.1} parent=1 // pred_check_branch
      %78 = sbr.rel (0) target = $region45
    $region44: #{tpu_custom_call.1} parent=1 // pred_region
      %79 = dma.done [#allocation10], 4096
    $region45: #{tpu_custom_call.1} parent=1 // pred_fallthru
      _
    %p80 = scmp.eq.s32.totalorder 0, 0
    // Predicated region
    $region46: #{tpu_custom_call.1} parent=1 // pred_check
      %p81 = pneg %p80
    $region47: #{tpu_custom_call.1} parent=1 // pred_check_branch
      %83 = sbr.rel (%p81) target = $region49
    $region48: #{tpu_custom_call.1} parent=1 // pred_region
      %v84 = vld [vmem:[%s2] sm:$0x3]
      %v86 = vlaneseq
      %v87 = vshrl.u32 %v86, 7
      %v88 = vsub.s32 0, %v87
      %v89 = vrot.slane %v84, %v88
      %v90 = vlaneseq
      %v91 = vshrl.u32 %v90, 7
      %v92 = vsub.s32 1, %v91
      %v93 = vrot.slane %v84, %v92
      %96 = vst [vmem:[#allocation2] sm:$0xff] %v89
      %97 = vst [vmem:[#allocation2 + $0x8] sm:$0xff] %v93
    $region49: #{tpu_custom_call.1} parent=1 // pred_fallthru
      _
    %v98 = vld [vmem:[#allocation2] sm:$0xff]
    %v99 = vld [vmem:[#allocation2 + $0x8] sm:$0xff]
    %v100 = vld [vmem:[#allocation3] sm:$0xff]
    %v101 = vld [vmem:[#allocation3 + $0x8] sm:$0xff]
    %v102 = vld [vmem:[#allocation3 + $0x10] sm:$0xff]
    %v103 = vld [vmem:[#allocation3 + $0x18] sm:$0xff]
    %v104 = vld [vmem:[#allocation3 + $0x20] sm:$0xff]
    %v105 = vld [vmem:[#allocation3 + $0x28] sm:$0xff]
    %v106 = vld [vmem:[#allocation6] sm:$0xff]
    %v107 = vld [vmem:[#allocation6 + $0x8] sm:$0xff]
    %v108 = vld [vmem:[#allocation6 + $0x10] sm:$0xff]
    %v109 = vld [vmem:[#allocation6 + $0x18] sm:$0xff]
    %v110 = vld [vmem:[#allocation6 + $0x20] sm:$0xff]
    %v111 = vld [vmem:[#allocation6 + $0x28] sm:$0xff]
    %v112 = vld [vmem:[#allocation6 + $0x30] sm:$0xff]
    %v113 = vld [vmem:[#allocation6 + $0x38] sm:$0xff]
    %v114 = vld [vmem:[#allocation6 + $0x40] sm:$0xff]
    %v115 = vld [vmem:[#allocation6 + $0x48] sm:$0xff]
    %v116 = vld [vmem:[#allocation6 + $0x50] sm:$0xff]
    %v117 = vld [vmem:[#allocation6 + $0x58] sm:$0xff]
    %v118 = vld [vmem:[#allocation6 + $0x60] sm:$0xff]
    %v119 = vld [vmem:[#allocation6 + $0x68] sm:$0xff]
    %v120 = vld [vmem:[#allocation6 + $0x70] sm:$0xff]
    %v121 = vld [vmem:[#allocation6 + $0x78] sm:$0xff]
    %v122 = vld [vmem:[#allocation6 + $0x80] sm:$0xff]
    %v123 = vld [vmem:[#allocation6 + $0x88] sm:$0xff]
    %v124 = vld [vmem:[#allocation6 + $0x90] sm:$0xff]
    %v125 = vld [vmem:[#allocation6 + $0x98] sm:$0xff]
    %v126 = vld [vmem:[#allocation6 + $0xa0] sm:$0xff]
    %v127 = vld [vmem:[#allocation6 + $0xa8] sm:$0xff]
    %v128 = vld [vmem:[#allocation6 + $0xb0] sm:$0xff]
    %v129 = vld [vmem:[#allocation6 + $0xb8] sm:$0xff]
    %v130 = vld [vmem:[#allocation6 + $0xc0] sm:$0xff]
    %v131 = vld [vmem:[#allocation6 + $0xc8] sm:$0xff]
    %v132 = vld [vmem:[#allocation6 + $0xd0] sm:$0xff]
    %v133 = vld [vmem:[#allocation6 + $0xd8] sm:$0xff]
    %v134 = vld [vmem:[#allocation6 + $0xe0] sm:$0xff]
    %v135 = vld [vmem:[#allocation6 + $0xe8] sm:$0xff]
    %v136 = vld [vmem:[#allocation6 + $0xf0] sm:$0xff]
    %v137 = vld [vmem:[#allocation6 + $0xf8] sm:$0xff]
    %v138 = vld [vmem:[#allocation6 + $0x100] sm:$0xff]
    %v139 = vld [vmem:[#allocation6 + $0x108] sm:$0xff]
    %v140 = vld [vmem:[#allocation6 + $0x110] sm:$0xff]
    %v141 = vld [vmem:[#allocation6 + $0x118] sm:$0xff]
    %v142 = vld [vmem:[#allocation6 + $0x120] sm:$0xff]
    %v143 = vld [vmem:[#allocation6 + $0x128] sm:$0xff]
    %v144 = vld [vmem:[#allocation6 + $0x130] sm:$0xff]
    %v145 = vld [vmem:[#allocation6 + $0x138] sm:$0xff]
    %v146 = vld [vmem:[#allocation6 + $0x140] sm:$0xff]
    %v147 = vld [vmem:[#allocation6 + $0x148] sm:$0xff]
    %v148 = vld [vmem:[#allocation6 + $0x150] sm:$0xff]
    %v149 = vld [vmem:[#allocation6 + $0x158] sm:$0xff]
    %v150 = vld [vmem:[#allocation6 + $0x160] sm:$0xff]
    %v151 = vld [vmem:[#allocation6 + $0x168] sm:$0xff]
    %v152 = vld [vmem:[#allocation6 + $0x170] sm:$0xff]
    %v153 = vld [vmem:[#allocation6 + $0x178] sm:$0xff]
    %v154 = vld [vmem:[#allocation6 + $0x180] sm:$0xff]
    %v155 = vld [vmem:[#allocation6 + $0x188] sm:$0xff]
    %v156 = vld [vmem:[#allocation6 + $0x190] sm:$0xff]
    %v157 = vld [vmem:[#allocation6 + $0x198] sm:$0xff]
    %v158 = vld [vmem:[#allocation6 + $0x1a0] sm:$0xff]
    %v159 = vld [vmem:[#allocation6 + $0x1a8] sm:$0xff]
    %v160 = vld [vmem:[#allocation6 + $0x1b0] sm:$0xff]
    %v161 = vld [vmem:[#allocation6 + $0x1b8] sm:$0xff]
    %v162 = vld [vmem:[#allocation6 + $0x1c0] sm:$0xff]
    %v163 = vld [vmem:[#allocation6 + $0x1c8] sm:$0xff]
    %v164 = vld [vmem:[#allocation6 + $0x1d0] sm:$0xff]
    %v165 = vld [vmem:[#allocation6 + $0x1d8] sm:$0xff]
    %v166 = vld [vmem:[#allocation6 + $0x1e0] sm:$0xff]
    %v167 = vld [vmem:[#allocation6 + $0x1e8] sm:$0xff]
    %v168 = vld [vmem:[#allocation6 + $0x1f0] sm:$0xff]
    %v169 = vld [vmem:[#allocation6 + $0x1f8] sm:$0xff]
    %v170 = vld [vmem:[#allocation6 + $0x200] sm:$0xff]
    %v171 = vld [vmem:[#allocation6 + $0x208] sm:$0xff]
    %v172 = vld [vmem:[#allocation6 + $0x210] sm:$0xff]
    %v173 = vld [vmem:[#allocation6 + $0x218] sm:$0xff]
    %v174 = vld [vmem:[#allocation6 + $0x220] sm:$0xff]
    %v175 = vld [vmem:[#allocation6 + $0x228] sm:$0xff]
    %v176 = vld [vmem:[#allocation6 + $0x230] sm:$0xff]
    %v177 = vld [vmem:[#allocation6 + $0x238] sm:$0xff]
    %v178 = vld [vmem:[#allocation6 + $0x240] sm:$0xff]
    %v179 = vld [vmem:[#allocation6 + $0x248] sm:$0xff]
    %v180 = vld [vmem:[#allocation6 + $0x250] sm:$0xff]
    %v181 = vld [vmem:[#allocation6 + $0x258] sm:$0xff]
    %v182 = vld [vmem:[#allocation6 + $0x260] sm:$0xff]
    %v183 = vld [vmem:[#allocation6 + $0x268] sm:$0xff]
    %v184 = vld [vmem:[#allocation6 + $0x270] sm:$0xff]
    %v185 = vld [vmem:[#allocation6 + $0x278] sm:$0xff]
    %v186 = vld [vmem:[#allocation6 + $0x280] sm:$0xff]
    %v187 = vld [vmem:[#allocation6 + $0x288] sm:$0xff]
    %v188 = vld [vmem:[#allocation6 + $0x290] sm:$0xff]
    %v189 = vld [vmem:[#allocation6 + $0x298] sm:$0xff]
    %v190 = vld [vmem:[#allocation6 + $0x2a0] sm:$0xff]
    %v191 = vld [vmem:[#allocation6 + $0x2a8] sm:$0xff]
    %v192 = vld [vmem:[#allocation6 + $0x2b0] sm:$0xff]
    %v193 = vld [vmem:[#allocation6 + $0x2b8] sm:$0xff]
    %v194 = vld [vmem:[#allocation6 + $0x2c0] sm:$0xff]
    %v195 = vld [vmem:[#allocation6 + $0x2c8] sm:$0xff]
    %v196 = vld [vmem:[#allocation6 + $0x2d0] sm:$0xff]
    %v197 = vld [vmem:[#allocation6 + $0x2d8] sm:$0xff]
    %v198 = vld [vmem:[#allocation6 + $0x2e0] sm:$0xff]
    %v199 = vld [vmem:[#allocation6 + $0x2e8] sm:$0xff]
    %v200 = vld [vmem:[#allocation6 + $0x2f0] sm:$0xff]
    %v201 = vld [vmem:[#allocation6 + $0x2f8] sm:$0xff]
    %v202 = vld [vmem:[#allocation6 + $0x300] sm:$0xff]
    %v203 = vld [vmem:[#allocation6 + $0x308] sm:$0xff]
    %v204 = vld [vmem:[#allocation6 + $0x310] sm:$0xff]
    %v205 = vld [vmem:[#allocation6 + $0x318] sm:$0xff]
    %v206 = vld [vmem:[#allocation6 + $0x320] sm:$0xff]
    %v207 = vld [vmem:[#allocation6 + $0x328] sm:$0xff]
    %v208 = vld [vmem:[#allocation6 + $0x330] sm:$0xff]
    %v209 = vld [vmem:[#allocation6 + $0x338] sm:$0xff]
    %v210 = vld [vmem:[#allocation6 + $0x340] sm:$0xff]
    %v211 = vld [vmem:[#allocation6 + $0x348] sm:$0xff]
    %v212 = vld [vmem:[#allocation6 + $0x350] sm:$0xff]
    %v213 = vld [vmem:[#allocation6 + $0x358] sm:$0xff]
    %v214 = vld [vmem:[#allocation6 + $0x360] sm:$0xff]
    %v215 = vld [vmem:[#allocation6 + $0x368] sm:$0xff]
    %v216 = vld [vmem:[#allocation6 + $0x370] sm:$0xff]
    %v217 = vld [vmem:[#allocation6 + $0x378] sm:$0xff]
    %v218 = vld [vmem:[#allocation6 + $0x380] sm:$0xff]
    %v219 = vld [vmem:[#allocation6 + $0x388] sm:$0xff]
    %v220 = vld [vmem:[#allocation6 + $0x390] sm:$0xff]
    %v221 = vld [vmem:[#allocation6 + $0x398] sm:$0xff]
    %v222 = vld [vmem:[#allocation6 + $0x3a0] sm:$0xff]
    %v223 = vld [vmem:[#allocation6 + $0x3a8] sm:$0xff]
    %v224 = vld [vmem:[#allocation6 + $0x3b0] sm:$0xff]
    %v225 = vld [vmem:[#allocation6 + $0x3b8] sm:$0xff]
    %v226 = vld [vmem:[#allocation6 + $0x3c0] sm:$0xff]
    %v227 = vld [vmem:[#allocation6 + $0x3c8] sm:$0xff]
    %v228 = vld [vmem:[#allocation6 + $0x3d0] sm:$0xff]
    %v229 = vld [vmem:[#allocation6 + $0x3d8] sm:$0xff]
    %v230 = vld [vmem:[#allocation6 + $0x3e0] sm:$0xff]
    %v231 = vld [vmem:[#allocation6 + $0x3e8] sm:$0xff]
    %v232 = vld [vmem:[#allocation6 + $0x3f0] sm:$0xff]
    %v233 = vld [vmem:[#allocation6 + $0x3f8] sm:$0xff]
    %v234 = vld [vmem:[#allocation6 + $0x400] sm:$0xff]
    %v235 = vld [vmem:[#allocation6 + $0x408] sm:$0xff]
    %v236 = vld [vmem:[#allocation6 + $0x410] sm:$0xff]
    %v237 = vld [vmem:[#allocation6 + $0x418] sm:$0xff]
    %v238 = vld [vmem:[#allocation6 + $0x420] sm:$0xff]
    %v239 = vld [vmem:[#allocation6 + $0x428] sm:$0xff]
    %v240 = vld [vmem:[#allocation6 + $0x430] sm:$0xff]
    %v241 = vld [vmem:[#allocation6 + $0x438] sm:$0xff]
    %v242 = vld [vmem:[#allocation6 + $0x440] sm:$0xff]
    %v243 = vld [vmem:[#allocation6 + $0x448] sm:$0xff]
    %v244 = vld [vmem:[#allocation6 + $0x450] sm:$0xff]
    %v245 = vld [vmem:[#allocation6 + $0x458] sm:$0xff]
    %v246 = vld [vmem:[#allocation6 + $0x460] sm:$0xff]
    %v247 = vld [vmem:[#allocation6 + $0x468] sm:$0xff]
    %v248 = vld [vmem:[#allocation6 + $0x470] sm:$0xff]
    %v249 = vld [vmem:[#allocation6 + $0x478] sm:$0xff]
    %v250 = vld [vmem:[#allocation6 + $0x480] sm:$0xff]
    %v251 = vld [vmem:[#allocation6 + $0x488] sm:$0xff]
    %v252 = vld [vmem:[#allocation6 + $0x490] sm:$0xff]
    %v253 = vld [vmem:[#allocation6 + $0x498] sm:$0xff]
    %v254 = vld [vmem:[#allocation6 + $0x4a0] sm:$0xff]
    %v255 = vld [vmem:[#allocation6 + $0x4a8] sm:$0xff]
    %v256 = vld [vmem:[#allocation6 + $0x4b0] sm:$0xff]
    %v257 = vld [vmem:[#allocation6 + $0x4b8] sm:$0xff]
    %v258 = vld [vmem:[#allocation6 + $0x4c0] sm:$0xff]
    %v259 = vld [vmem:[#allocation6 + $0x4c8] sm:$0xff]
    %v260 = vld [vmem:[#allocation6 + $0x4d0] sm:$0xff]
    %v261 = vld [vmem:[#allocation6 + $0x4d8] sm:$0xff]
    %v262 = vld [vmem:[#allocation6 + $0x4e0] sm:$0xff]
    %v263 = vld [vmem:[#allocation6 + $0x4e8] sm:$0xff]
    %v264 = vld [vmem:[#allocation6 + $0x4f0] sm:$0xff]
    %v265 = vld [vmem:[#allocation6 + $0x4f8] sm:$0xff]
    %v266 = vld [vmem:[#allocation6 + $0x500] sm:$0xff]
    %v267 = vld [vmem:[#allocation6 + $0x508] sm:$0xff]
    %v268 = vld [vmem:[#allocation6 + $0x510] sm:$0xff]
    %v269 = vld [vmem:[#allocation6 + $0x518] sm:$0xff]
    %v270 = vld [vmem:[#allocation6 + $0x520] sm:$0xff]
    %v271 = vld [vmem:[#allocation6 + $0x528] sm:$0xff]
    %v272 = vld [vmem:[#allocation6 + $0x530] sm:$0xff]
    %v273 = vld [vmem:[#allocation6 + $0x538] sm:$0xff]
    %v274 = vld [vmem:[#allocation6 + $0x540] sm:$0xff]
    %v275 = vld [vmem:[#allocation6 + $0x548] sm:$0xff]
    %v276 = vld [vmem:[#allocation6 + $0x550] sm:$0xff]
    %v277 = vld [vmem:[#allocation6 + $0x558] sm:$0xff]
    %v278 = vld [vmem:[#allocation6 + $0x560] sm:$0xff]
    %v279 = vld [vmem:[#allocation6 + $0x568] sm:$0xff]
    %v280 = vld [vmem:[#allocation6 + $0x570] sm:$0xff]
    %v281 = vld [vmem:[#allocation6 + $0x578] sm:$0xff]
    %v282 = vld [vmem:[#allocation6 + $0x580] sm:$0xff]
    %v283 = vld [vmem:[#allocation6 + $0x588] sm:$0xff]
    %v284 = vld [vmem:[#allocation6 + $0x590] sm:$0xff]
    %v285 = vld [vmem:[#allocation6 + $0x598] sm:$0xff]
    %v286 = vld [vmem:[#allocation6 + $0x5a0] sm:$0xff]
    %v287 = vld [vmem:[#allocation6 + $0x5a8] sm:$0xff]
    %v288 = vld [vmem:[#allocation6 + $0x5b0] sm:$0xff]
    %v289 = vld [vmem:[#allocation6 + $0x5b8] sm:$0xff]
    %v290 = vld [vmem:[#allocation6 + $0x5c0] sm:$0xff]
    %v291 = vld [vmem:[#allocation6 + $0x5c8] sm:$0xff]
    %v292 = vld [vmem:[#allocation6 + $0x5d0] sm:$0xff]
    %v293 = vld [vmem:[#allocation6 + $0x5d8] sm:$0xff]
    %v294 = vld [vmem:[#allocation6 + $0x5e0] sm:$0xff]
    %v295 = vld [vmem:[#allocation6 + $0x5e8] sm:$0xff]
    %v296 = vld [vmem:[#allocation6 + $0x5f0] sm:$0xff]
    %v297 = vld [vmem:[#allocation6 + $0x5f8] sm:$0xff]
    %298 = vmatprep.subr.mxu0 %v137
    %299 = vmatpush1.msra.mxu0 %v136
    %300 = vmatprep.subr.mxu0 %v135
    %301 = vmatpush1.msra.mxu0 %v134
    %302 = vmatprep.subr.mxu0 %v133
    %303 = vmatpush1.msra.mxu0 %v132
    %304 = vmatprep.subr.mxu0 %v131
    %305 = vmatpush1.msra.mxu0 %v130
    %306 = vmatprep.subr.mxu0 %v129
    %307 = vmatpush1.msra.mxu0 %v128
    %308 = vmatprep.subr.mxu0 %v127
    %309 = vmatpush1.msra.mxu0 %v126
    %310 = vmatprep.subr.mxu0 %v125
    %311 = vmatpush1.msra.mxu0 %v124
    %312 = vmatprep.subr.mxu0 %v123
    %313 = vmatpush1.msra.mxu0 %v122
    %314 = vmatprep.subr.mxu0 %v121
    %315 = vmatpush1.msra.mxu0 %v120
    %316 = vmatprep.subr.mxu0 %v119
    %317 = vmatpush1.msra.mxu0 %v118
    %318 = vmatprep.subr.mxu0 %v117
    %319 = vmatpush1.msra.mxu0 %v116
    %320 = vmatprep.subr.mxu0 %v115
    %321 = vmatpush1.msra.mxu0 %v114
    %322 = vmatprep.subr.mxu0 %v113
    %323 = vmatpush1.msra.mxu0 %v112
    %324 = vmatprep.subr.mxu0 %v111
    %325 = vmatpush1.msra.mxu0 %v110
    %326 = vmatprep.subr.mxu0 %v109
    %327 = vmatpush1.msra.mxu0 %v108
    %328 = vmatprep.subr.mxu0 %v107
    %329 = vmatpush1.msra.mxu0 %v106
    %330 = vmatprep.subr.mxu0 %v169
    %331 = vmatpush2.msra.mxu0 %v168
    %332 = vmatprep.subr.mxu0 %v167
    %333 = vmatpush2.msra.mxu0 %v166
    %334 = vmatprep.subr.mxu0 %v165
    %335 = vmatpush2.msra.mxu0 %v164
    %336 = vmatprep.subr.mxu0 %v163
    %337 = vmatpush2.msra.mxu0 %v162
    %338 = vmatprep.subr.mxu0 %v161
    %339 = vmatpush2.msra.mxu0 %v160
    %340 = vmatprep.subr.mxu0 %v159
    %341 = vmatpush2.msra.mxu0 %v158
    %342 = vmatprep.subr.mxu0 %v157
    %343 = vmatpush2.msra.mxu0 %v156
    %344 = vmatprep.subr.mxu0 %v155
    %345 = vmatpush2.msra.mxu0 %v154
    %346 = vmatprep.subr.mxu0 %v153
    %347 = vmatpush2.msra.mxu0 %v152
    %348 = vmatprep.subr.mxu0 %v151
    %349 = vmatpush2.msra.mxu0 %v150
    %350 = vmatprep.subr.mxu0 %v149
    %351 = vmatpush2.msra.mxu0 %v148
    %352 = vmatprep.subr.mxu0 %v147
    %353 = vmatpush2.msra.mxu0 %v146
    %354 = vmatprep.subr.mxu0 %v145
    %355 = vmatpush2.msra.mxu0 %v144
    %356 = vmatprep.subr.mxu0 %v143
    %357 = vmatpush2.msra.mxu0 %v142
    %358 = vmatprep.subr.mxu0 %v141
    %359 = vmatpush2.msra.mxu0 %v140
    %360 = vmatprep.subr.mxu0 %v139
    %361 = vmatpush2.msra.mxu0 %v138
    %362 = vmatprep.mubr.f32.mxu0 %v101
    %363 = vmatmul.mubr.f32.gmra.mxu0 %v100
    %v364 = vpop.f32.mrf.mxu0
    %v365 = vadd.f32 0.0, %v364
    %v366 = vpop.f32.mrf.mxu0
    %v367 = vadd.f32 0.0, %v366
    %368 = vdwg.mxu0
    %369 = vmatprep.subr.mxu0 %v201
    %370 = vmatpush1.msra.mxu0 %v200
    %371 = vmatprep.subr.mxu0 %v199
    %372 = vmatpush1.msra.mxu0 %v198
    %373 = vmatprep.subr.mxu0 %v197
    %374 = vmatpush1.msra.mxu0 %v196
    %375 = vmatprep.subr.mxu0 %v195
    %376 = vmatpush1.msra.mxu0 %v194
    %377 = vmatprep.subr.mxu0 %v193
    %378 = vmatpush1.msra.mxu0 %v192
    %379 = vmatprep.subr.mxu0 %v191
    %380 = vmatpush1.msra.mxu0 %v190
    %381 = vmatprep.subr.mxu0 %v189
    %382 = vmatpush1.msra.mxu0 %v188
    %383 = vmatprep.subr.mxu0 %v187
    %384 = vmatpush1.msra.mxu0 %v186
    %385 = vmatprep.subr.mxu0 %v185
    %386 = vmatpush1.msra.mxu0 %v184
    %387 = vmatprep.subr.mxu0 %v183
    %388 = vmatpush1.msra.mxu0 %v182
    %389 = vmatprep.subr.mxu0 %v181
    %390 = vmatpush1.msra.mxu0 %v180
    %391 = vmatprep.subr.mxu0 %v179
    %392 = vmatpush1.msra.mxu0 %v178
    %393 = vmatprep.subr.mxu0 %v177
    %394 = vmatpush1.msra.mxu0 %v176
    %395 = vmatprep.subr.mxu0 %v175
    %396 = vmatpush1.msra.mxu0 %v174
    %397 = vmatprep.subr.mxu0 %v173
    %398 = vmatpush1.msra.mxu0 %v172
    %399 = vmatprep.subr.mxu0 %v171
    %400 = vmatpush1.msra.mxu0 %v170
    %401 = vmatprep.subr.mxu0 %v233
    %402 = vmatpush2.msra.mxu0 %v232
    %403 = vmatprep.subr.mxu0 %v231
    %404 = vmatpush2.msra.mxu0 %v230
    %405 = vmatprep.subr.mxu0 %v229
    %406 = vmatpush2.msra.mxu0 %v228
    %407 = vmatprep.subr.mxu0 %v227
    %408 = vmatpush2.msra.mxu0 %v226
    %409 = vmatprep.subr.mxu0 %v225
    %410 = vmatpush2.msra.mxu0 %v224
    %411 = vmatprep.subr.mxu0 %v223
    %412 = vmatpush2.msra.mxu0 %v222
    %413 = vmatprep.subr.mxu0 %v221
    %414 = vmatpush2.msra.mxu0 %v220
    %415 = vmatprep.subr.mxu0 %v219
    %416 = vmatpush2.msra.mxu0 %v218
    %417 = vmatprep.subr.mxu0 %v217
    %418 = vmatpush2.msra.mxu0 %v216
    %419 = vmatprep.subr.mxu0 %v215
    %420 = vmatpush2.msra.mxu0 %v214
    %421 = vmatprep.subr.mxu0 %v213
    %422 = vmatpush2.msra.mxu0 %v212
    %423 = vmatprep.subr.mxu0 %v211
    %424 = vmatpush2.msra.mxu0 %v210
    %425 = vmatprep.subr.mxu0 %v209
    %426 = vmatpush2.msra.mxu0 %v208
    %427 = vmatprep.subr.mxu0 %v207
    %428 = vmatpush2.msra.mxu0 %v206
    %429 = vmatprep.subr.mxu0 %v205
    %430 = vmatpush2.msra.mxu0 %v204
    %431 = vmatprep.subr.mxu0 %v203
    %432 = vmatpush2.msra.mxu0 %v202
    %433 = vmatprep.mubr.f32.mxu0 %v103
    %434 = vmatmul.mubr.f32.gmra.mxu0 %v102
    %v435 = vpop.f32.mrf.mxu0
    %v436 = vadd.f32 %v365, %v435
    %v437 = vpop.f32.mrf.mxu0
    %v438 = vadd.f32 %v367, %v437
    %439 = vdwg.mxu0
    %440 = vmatprep.subr.mxu0 %v265
    %441 = vmatpush1.msra.mxu0 %v264
    %442 = vmatprep.subr.mxu0 %v263
    %443 = vmatpush1.msra.mxu0 %v262
    %444 = vmatprep.subr.mxu0 %v261
    %445 = vmatpush1.msra.mxu0 %v260
    %446 = vmatprep.subr.mxu0 %v259
    %447 = vmatpush1.msra.mxu0 %v258
    %448 = vmatprep.subr.mxu0 %v257
    %449 = vmatpush1.msra.mxu0 %v256
    %450 = vmatprep.subr.mxu0 %v255
    %451 = vmatpush1.msra.mxu0 %v254
    %452 = vmatprep.subr.mxu0 %v253
    %453 = vmatpush1.msra.mxu0 %v252
    %454 = vmatprep.subr.mxu0 %v251
    %455 = vmatpush1.msra.mxu0 %v250
    %456 = vmatprep.subr.mxu0 %v249
    %457 = vmatpush1.msra.mxu0 %v248
    %458 = vmatprep.subr.mxu0 %v247
    %459 = vmatpush1.msra.mxu0 %v246
    %460 = vmatprep.subr.mxu0 %v245
    %461 = vmatpush1.msra.mxu0 %v244
    %462 = vmatprep.subr.mxu0 %v243
    %463 = vmatpush1.msra.mxu0 %v242
    %464 = vmatprep.subr.mxu0 %v241
    %465 = vmatpush1.msra.mxu0 %v240
    %466 = vmatprep.subr.mxu0 %v239
    %467 = vmatpush1.msra.mxu0 %v238
    %468 = vmatprep.subr.mxu0 %v237
    %469 = vmatpush1.msra.mxu0 %v236
    %470 = vmatprep.subr.mxu0 %v235
    %471 = vmatpush1.msra.mxu0 %v234
    %472 = vmatprep.subr.mxu0 %v297
    %473 = vmatpush2.msra.mxu0 %v296
    %474 = vmatprep.subr.mxu0 %v295
    %475 = vmatpush2.msra.mxu0 %v294
    %476 = vmatprep.subr.mxu0 %v293
    %477 = vmatpush2.msra.mxu0 %v292
    %478 = vmatprep.subr.mxu0 %v291
    %479 = vmatpush2.msra.mxu0 %v290
    %480 = vmatprep.subr.mxu0 %v289
    %481 = vmatpush2.msra.mxu0 %v288
    %482 = vmatprep.subr.mxu0 %v287
    %483 = vmatpush2.msra.mxu0 %v286
    %484 = vmatprep.subr.mxu0 %v285
    %485 = vmatpush2.msra.mxu0 %v284
    %486 = vmatprep.subr.mxu0 %v283
    %487 = vmatpush2.msra.mxu0 %v282
    %488 = vmatprep.subr.mxu0 %v281
    %489 = vmatpush2.msra.mxu0 %v280
    %490 = vmatprep.subr.mxu0 %v279
    %491 = vmatpush2.msra.mxu0 %v278
    %492 = vmatprep.subr.mxu0 %v277
    %493 = vmatpush2.msra.mxu0 %v276
    %494 = vmatprep.subr.mxu0 %v275
    %495 = vmatpush2.msra.mxu0 %v274
    %496 = vmatprep.subr.mxu0 %v273
    %497 = vmatpush2.msra.mxu0 %v272
    %498 = vmatprep.subr.mxu0 %v271
    %499 = vmatpush2.msra.mxu0 %v270
    %500 = vmatprep.subr.mxu0 %v269
    %501 = vmatpush2.msra.mxu0 %v268
    %502 = vmatprep.subr.mxu0 %v267
    %503 = vmatpush2.msra.mxu0 %v266
    %504 = vmatprep.mubr.f32.mxu0 %v105
    %505 = vmatmul.mubr.f32.gmra.mxu0 %v104
    %v506 = vpop.f32.mrf.mxu0
    %v507 = vadd.f32 %v436, %v506
    %v508 = vpop.f32.mrf.mxu0
    %v509 = vadd.f32 %v438, %v508
    %510 = vdwg.mxu0
    %v511 = vadd.f32 %v98, %v507
    %v512 = vadd.f32 %v99, %v509
    %513 = vst [vmem:[#allocation2] sm:$0xff] %v511
    %514 = vst [vmem:[#allocation2 + $0x8] sm:$0xff] %v512
    // Predicated region
    $region50: #{tpu_custom_call.1} parent=1 // pred_check
      %p515 = pneg %p80
    $region51: #{tpu_custom_call.1} parent=1 // pred_check_branch
      %517 = sbr.rel (%p515) target = $region53
    $region52: #{tpu_custom_call.1} parent=1 // pred_region
      %v518 = vld [vmem:[#allocation2] sm:$0xff]
      %v519 = vld [vmem:[#allocation2 + $0x8] sm:$0xff]
      %v520 = vmax.f32 %v518, 0.0
      %v521 = vmax.f32 %v519, 0.0
      %v522 = vld [vmem:[#allocation8] sm:$0xff]
      %v523 = vld [vmem:[#allocation8 + $0x8] sm:$0xff]
      %v524 = vld [vmem:[#allocation8 + $0x10] sm:$0xff]
      %v525 = vld [vmem:[#allocation8 + $0x18] sm:$0xff]
      %v526 = vld [vmem:[#allocation8 + $0x20] sm:$0xff]
      %v527 = vld [vmem:[#allocation8 + $0x28] sm:$0xff]
      %v528 = vld [vmem:[#allocation8 + $0x30] sm:$0xff]
      %v529 = vld [vmem:[#allocation8 + $0x38] sm:$0xff]
      %v530 = vld [vmem:[#allocation8 + $0x40] sm:$0xff]
      %v531 = vld [vmem:[#allocation8 + $0x48] sm:$0xff]
      %v532 = vld [vmem:[#allocation8 + $0x50] sm:$0xff]
      %v533 = vld [vmem:[#allocation8 + $0x58] sm:$0xff]
      %v534 = vld [vmem:[#allocation8 + $0x60] sm:$0xff]
      %v535 = vld [vmem:[#allocation8 + $0x68] sm:$0xff]
      %v536 = vld [vmem:[#allocation8 + $0x70] sm:$0xff]
      %v537 = vld [vmem:[#allocation8 + $0x78] sm:$0xff]
      %v538 = vld [vmem:[#allocation8 + $0x80] sm:$0xff]
      %v539 = vld [vmem:[#allocation8 + $0x88] sm:$0xff]
      %v540 = vld [vmem:[#allocation8 + $0x90] sm:$0xff]
      %v541 = vld [vmem:[#allocation8 + $0x98] sm:$0xff]
      %v542 = vld [vmem:[#allocation8 + $0xa0] sm:$0xff]
      %v543 = vld [vmem:[#allocation8 + $0xa8] sm:$0xff]
      %v544 = vld [vmem:[#allocation8 + $0xb0] sm:$0xff]
      %v545 = vld [vmem:[#allocation8 + $0xb8] sm:$0xff]
      %v546 = vld [vmem:[#allocation8 + $0xc0] sm:$0xff]
      %v547 = vld [vmem:[#allocation8 + $0xc8] sm:$0xff]
      %v548 = vld [vmem:[#allocation8 + $0xd0] sm:$0xff]
      %v549 = vld [vmem:[#allocation8 + $0xd8] sm:$0xff]
      %v550 = vld [vmem:[#allocation8 + $0xe0] sm:$0xff]
      %v551 = vld [vmem:[#allocation8 + $0xe8] sm:$0xff]
      %v552 = vld [vmem:[#allocation8 + $0xf0] sm:$0xff]
      %v553 = vld [vmem:[#allocation8 + $0xf8] sm:$0xff]
      %v554 = vld [vmem:[#allocation8 + $0x100] sm:$0xff]
      %v555 = vld [vmem:[#allocation8 + $0x108] sm:$0xff]
      %v556 = vld [vmem:[#allocation8 + $0x110] sm:$0xff]
      %v557 = vld [vmem:[#allocation8 + $0x118] sm:$0xff]
      %v558 = vld [vmem:[#allocation8 + $0x120] sm:$0xff]
      %v559 = vld [vmem:[#allocation8 + $0x128] sm:$0xff]
      %v560 = vld [vmem:[#allocation8 + $0x130] sm:$0xff]
      %v561 = vld [vmem:[#allocation8 + $0x138] sm:$0xff]
      %v562 = vld [vmem:[#allocation8 + $0x140] sm:$0xff]
      %v563 = vld [vmem:[#allocation8 + $0x148] sm:$0xff]
      %v564 = vld [vmem:[#allocation8 + $0x150] sm:$0xff]
      %v565 = vld [vmem:[#allocation8 + $0x158] sm:$0xff]
      %v566 = vld [vmem:[#allocation8 + $0x160] sm:$0xff]
      %v567 = vld [vmem:[#allocation8 + $0x168] sm:$0xff]
      %v568 = vld [vmem:[#allocation8 + $0x170] sm:$0xff]
      %v569 = vld [vmem:[#allocation8 + $0x178] sm:$0xff]
      %v570 = vld [vmem:[#allocation8 + $0x180] sm:$0xff]
      %v571 = vld [vmem:[#allocation8 + $0x188] sm:$0xff]
      %v572 = vld [vmem:[#allocation8 + $0x190] sm:$0xff]
      %v573 = vld [vmem:[#allocation8 + $0x198] sm:$0xff]
      %v574 = vld [vmem:[#allocation8 + $0x1a0] sm:$0xff]
      %v575 = vld [vmem:[#allocation8 + $0x1a8] sm:$0xff]
      %v576 = vld [vmem:[#allocation8 + $0x1b0] sm:$0xff]
      %v577 = vld [vmem:[#allocation8 + $0x1b8] sm:$0xff]
      %v578 = vld [vmem:[#allocation8 + $0x1c0] sm:$0xff]
      %v579 = vld [vmem:[#allocation8 + $0x1c8] sm:$0xff]
      %v580 = vld [vmem:[#allocation8 + $0x1d0] sm:$0xff]
      %v581 = vld [vmem:[#allocation8 + $0x1d8] sm:$0xff]
      %v582 = vld [vmem:[#allocation8 + $0x1e0] sm:$0xff]
      %v583 = vld [vmem:[#allocation8 + $0x1e8] sm:$0xff]
      %v584 = vld [vmem:[#allocation8 + $0x1f0] sm:$0xff]
      %v585 = vld [vmem:[#allocation8 + $0x1f8] sm:$0xff]
      %v586 = vld [vmem:[%s4] sm:$0x3]
      %v588 = vlaneseq
      %v589 = vshrl.u32 %v588, 7
      %v590 = vsub.s32 0, %v589
      %v591 = vrot.slane %v586, %v590
      %v592 = vlaneseq
      %v593 = vshrl.u32 %v592, 7
      %v594 = vsub.s32 1, %v593
      %v595 = vrot.slane %v586, %v594
      %598 = vmatprep.subr.mxu0 %v553
      %599 = vmatpush1.msra.mxu0 %v552
      %600 = vmatprep.subr.mxu0 %v551
      %601 = vmatpush1.msra.mxu0 %v550
      %602 = vmatprep.subr.mxu0 %v549
      %603 = vmatpush1.msra.mxu0 %v548
      %604 = vmatprep.subr.mxu0 %v547
      %605 = vmatpush1.msra.mxu0 %v546
      %606 = vmatprep.subr.mxu0 %v545
      %607 = vmatpush1.msra.mxu0 %v544
      %608 = vmatprep.subr.mxu0 %v543
      %609 = vmatpush1.msra.mxu0 %v542
      %610 = vmatprep.subr.mxu0 %v541
      %611 = vmatpush1.msra.mxu0 %v540
      %612 = vmatprep.subr.mxu0 %v539
      %613 = vmatpush1.msra.mxu0 %v538
      %614 = vmatprep.subr.mxu0 %v537
      %615 = vmatpush1.msra.mxu0 %v536
      %616 = vmatprep.subr.mxu0 %v535
      %617 = vmatpush1.msra.mxu0 %v534
      %618 = vmatprep.subr.mxu0 %v533
      %619 = vmatpush1.msra.mxu0 %v532
      %620 = vmatprep.subr.mxu0 %v531
      %621 = vmatpush1.msra.mxu0 %v530
      %622 = vmatprep.subr.mxu0 %v529
      %623 = vmatpush1.msra.mxu0 %v528
      %624 = vmatprep.subr.mxu0 %v527
      %625 = vmatpush1.msra.mxu0 %v526
      %626 = vmatprep.subr.mxu0 %v525
      %627 = vmatpush1.msra.mxu0 %v524
      %628 = vmatprep.subr.mxu0 %v523
      %629 = vmatpush1.msra.mxu0 %v522
      %630 = vmatprep.subr.mxu0 %v585
      %631 = vmatpush2.msra.mxu0 %v584
      %632 = vmatprep.subr.mxu0 %v583
      %633 = vmatpush2.msra.mxu0 %v582
      %634 = vmatprep.subr.mxu0 %v581
      %635 = vmatpush2.msra.mxu0 %v580
      %636 = vmatprep.subr.mxu0 %v579
      %637 = vmatpush2.msra.mxu0 %v578
      %638 = vmatprep.subr.mxu0 %v577
      %639 = vmatpush2.msra.mxu0 %v576
      %640 = vmatprep.subr.mxu0 %v575
      %641 = vmatpush2.msra.mxu0 %v574
      %642 = vmatprep.subr.mxu0 %v573
      %643 = vmatpush2.msra.mxu0 %v572
      %644 = vmatprep.subr.mxu0 %v571
      %645 = vmatpush2.msra.mxu0 %v570
      %646 = vmatprep.subr.mxu0 %v569
      %647 = vmatpush2.msra.mxu0 %v568
      %648 = vmatprep.subr.mxu0 %v567
      %649 = vmatpush2.msra.mxu0 %v566
      %650 = vmatprep.subr.mxu0 %v565
      %651 = vmatpush2.msra.mxu0 %v564
      %652 = vmatprep.subr.mxu0 %v563
      %653 = vmatpush2.msra.mxu0 %v562
      %654 = vmatprep.subr.mxu0 %v561
      %655 = vmatpush2.msra.mxu0 %v560
      %656 = vmatprep.subr.mxu0 %v559
      %657 = vmatpush2.msra.mxu0 %v558
      %658 = vmatprep.subr.mxu0 %v557
      %659 = vmatpush2.msra.mxu0 %v556
      %660 = vmatprep.subr.mxu0 %v555
      %661 = vmatpush2.msra.mxu0 %v554
      %662 = vmatprep.mubr.f32.mxu0 %v521
      %663 = vmatmul.mubr.f32.gmra.mxu0 %v520
      %v664 = vpop.f32.mrf.mxu0
      %v665 = vadd.f32 %v591, %v664
      %v666 = vpop.f32.mrf.mxu0
      %v667 = vadd.f32 %v595, %v666
      %668 = vdwg.mxu0
      %v669 = vmax.f32 %v665, 0.0
      %v670 = vmax.f32 %v667, 0.0
      %v671 = vld [vmem:[#allocation9] sm:$0xff]
      %v672 = vld [vmem:[#allocation9 + $0x8] sm:$0xff]
      %v673 = vld [vmem:[#allocation9 + $0x10] sm:$0xff]
      %v674 = vld [vmem:[#allocation9 + $0x18] sm:$0xff]
      %v675 = vld [vmem:[#allocation9 + $0x20] sm:$0xff]
      %v676 = vld [vmem:[#allocation9 + $0x28] sm:$0xff]
      %v677 = vld [vmem:[#allocation9 + $0x30] sm:$0xff]
      %v678 = vld [vmem:[#allocation9 + $0x38] sm:$0xff]
      %v679 = vld [vmem:[#allocation9 + $0x40] sm:$0xff]
      %v680 = vld [vmem:[#allocation9 + $0x48] sm:$0xff]
      %v681 = vld [vmem:[#allocation9 + $0x50] sm:$0xff]
      %v682 = vld [vmem:[#allocation9 + $0x58] sm:$0xff]
      %v683 = vld [vmem:[#allocation9 + $0x60] sm:$0xff]
      %v684 = vld [vmem:[#allocation9 + $0x68] sm:$0xff]
      %v685 = vld [vmem:[#allocation9 + $0x70] sm:$0xff]
      %v686 = vld [vmem:[#allocation9 + $0x78] sm:$0xff]
      %v687 = vld [vmem:[#allocation9 + $0x80] sm:$0xff]
      %v688 = vld [vmem:[#allocation9 + $0x88] sm:$0xff]
      %v689 = vld [vmem:[#allocation9 + $0x90] sm:$0xff]
      %v690 = vld [vmem:[#allocation9 + $0x98] sm:$0xff]
      %v691 = vld [vmem:[#allocation9 + $0xa0] sm:$0xff]
      %v692 = vld [vmem:[#allocation9 + $0xa8] sm:$0xff]
      %v693 = vld [vmem:[#allocation9 + $0xb0] sm:$0xff]
      %v694 = vld [vmem:[#allocation9 + $0xb8] sm:$0xff]
      %v695 = vld [vmem:[#allocation9 + $0xc0] sm:$0xff]
      %v696 = vld [vmem:[#allocation9 + $0xc8] sm:$0xff]
      %v697 = vld [vmem:[#allocation9 + $0xd0] sm:$0xff]
      %v698 = vld [vmem:[#allocation9 + $0xd8] sm:$0xff]
      %v699 = vld [vmem:[#allocation9 + $0xe0] sm:$0xff]
      %v700 = vld [vmem:[#allocation9 + $0xe8] sm:$0xff]
      %v701 = vld [vmem:[#allocation9 + $0xf0] sm:$0xff]
      %v702 = vld [vmem:[#allocation9 + $0xf8] sm:$0xff]
      %v703 = vld [vmem:[%s6] sm:$0x1]
      %v705 = vlaneseq
      %v706 = vshrl.u32 %v705, 7
      %v707 = vsub.s32 0, %v706
      %v708 = vrot.slane %v703, %v707
      %710 = vmatprep.subr.mxu0 0.0
      %711 = vmatpush1.msra.mxu0 %v686
      %712 = vmatprep.subr.mxu0 0.0
      %713 = vmatpush1.msra.mxu0 %v685
      %714 = vmatprep.subr.mxu0 0.0
      %715 = vmatpush1.msra.mxu0 %v684
      %716 = vmatprep.subr.mxu0 0.0
      %717 = vmatpush1.msra.mxu0 %v683
      %718 = vmatprep.subr.mxu0 0.0
      %719 = vmatpush1.msra.mxu0 %v682
      %720 = vmatprep.subr.mxu0 0.0
      %721 = vmatpush1.msra.mxu0 %v681
      %722 = vmatprep.subr.mxu0 0.0
      %723 = vmatpush1.msra.mxu0 %v680
      %724 = vmatprep.subr.mxu0 0.0
      %725 = vmatpush1.msra.mxu0 %v679
      %726 = vmatprep.subr.mxu0 0.0
      %727 = vmatpush1.msra.mxu0 %v678
      %728 = vmatprep.subr.mxu0 0.0
      %729 = vmatpush1.msra.mxu0 %v677
      %730 = vmatprep.subr.mxu0 0.0
      %731 = vmatpush1.msra.mxu0 %v676
      %732 = vmatprep.subr.mxu0 0.0
      %733 = vmatpush1.msra.mxu0 %v675
      %734 = vmatprep.subr.mxu0 0.0
      %735 = vmatpush1.msra.mxu0 %v674
      %736 = vmatprep.subr.mxu0 0.0
      %737 = vmatpush1.msra.mxu0 %v673
      %738 = vmatprep.subr.mxu0 0.0
      %739 = vmatpush1.msra.mxu0 %v672
      %740 = vmatprep.subr.mxu0 0.0
      %741 = vmatpush1.msra.mxu0 %v671
      %742 = vmatprep.subr.mxu0 0.0
      %743 = vmatpush2.msra.mxu0 %v702
      %744 = vmatprep.subr.mxu0 0.0
      %745 = vmatpush2.msra.mxu0 %v701
      %746 = vmatprep.subr.mxu0 0.0
      %747 = vmatpush2.msra.mxu0 %v700
      %748 = vmatprep.subr.mxu0 0.0
      %749 = vmatpush2.msra.mxu0 %v699
      %750 = vmatprep.subr.mxu0 0.0
      %751 = vmatpush2.msra.mxu0 %v698
      %752 = vmatprep.subr.mxu0 0.0
      %753 = vmatpush2.msra.mxu0 %v697
      %754 = vmatprep.subr.mxu0 0.0
      %755 = vmatpush2.msra.mxu0 %v696
      %756 = vmatprep.subr.mxu0 0.0
      %757 = vmatpush2.msra.mxu0 %v695
      %758 = vmatprep.subr.mxu0 0.0
      %759 = vmatpush2.msra.mxu0 %v694
      %760 = vmatprep.subr.mxu0 0.0
      %761 = vmatpush2.msra.mxu0 %v693
      %762 = vmatprep.subr.mxu0 0.0
      %763 = vmatpush2.msra.mxu0 %v692
      %764 = vmatprep.subr.mxu0 0.0
      %765 = vmatpush2.msra.mxu0 %v691
      %766 = vmatprep.subr.mxu0 0.0
      %767 = vmatpush2.msra.mxu0 %v690
      %768 = vmatprep.subr.mxu0 0.0
      %769 = vmatpush2.msra.mxu0 %v689
      %770 = vmatprep.subr.mxu0 0.0
      %771 = vmatpush2.msra.mxu0 %v688
      %772 = vmatprep.subr.mxu0 0.0
      %773 = vmatpush2.msra.mxu0 %v687
      %774 = vmatprep.mubr.f32.mxu0 %v670
      %775 = vmatmul.mubr.f32.gmra.mxu0 %v669
      %v776 = vpop.f32.mrf.mxu0
      %v777 = vadd.f32 %v708, %v776
      %v778 = vpop.f32.mrf.mxu0
      %779 = vdwg.mxu0
      %780 = vst [vmem:[#allocation11] sm:$0xff] %v777
    $region53: #{tpu_custom_call.1} parent=1 // pred_fallthru
      _
    // Predicated region
    $region54: #{tpu_custom_call.1} parent=1 // pred_check
      _
    $region55: #{tpu_custom_call.1} parent=1 // pred_check_branch
      %782 = sbr.rel (0) target = $region57
    $region56: #{tpu_custom_call.1} parent=1 // pred_region
      %s784 = ssub.s32 128, 128
      %785 = vsyncadd [#allocation5], %s784
      %s787 = sshll.u32 [#allocation11], 4
      %s788 = int_to_ptr.vmem [resolvable:$true] %s787
      %790 = dma.vmem_to_hbm [thread:$0]  %s788, 128, %s7, [#allocation5]
    $region57: #{tpu_custom_call.1} parent=1 // pred_fallthru
      _
    // Predicated region
    $region58: #{tpu_custom_call.1} parent=1 // pred_check
      _
    $region59: #{tpu_custom_call.1} parent=1 // pred_check_branch
      %792 = sbr.rel (0) target = $region61
    $region60: #{tpu_custom_call.1} parent=1 // pred_region
      %793 = dma.done [#allocation5], 128
    $region61: #{tpu_custom_call.1} parent=1 // pred_fallthru
      _
    %794 = vsyncpa [#allocation4], 1
    %795 = vsyncpa [#allocation7], 1
    %796 = vsyncpa [#allocation10], 1
    %797 = vsyncpa [#allocation5], 1

</llo_original>
